<compile_context>
chip_gen: v6e
topology: v6e:2x2x1
jax: 0.10.0
libtpu: 0.0.40
codegen_flags: <defaults>
</compile_context>

<pallas_src>
import jax
import jax.numpy as jnp
from jax.experimental import pallas as pl
from jax.experimental.pallas import tpu as pltpu


def _rnn_seq_kernel(x_ref, h0_ref, wxh_ref, whh_ref, bh_ref,
                    wxo_ref, who_ref, bo_ref, out_ref, hid_ref):
    t = pl.program_id(0)
    last = pl.num_programs(0) - 1

    # hid_ref is the (B, H) output block; its block index never changes, so it
    # stays resident in VMEM across the whole grid and carries the hidden state.
    @pl.when(t == 0)
    def _():
        hid_ref[...] = h0_ref[...]

    x = x_ref[...]      # (B, I) input at timestep t (streamed block)
    h = hid_ref[...]    # (B, H) hidden BEFORE this step's update

    # Output projection + log-softmax only where it is consumed: the last step.
    @pl.when(t == last)
    def _():
        logits = (jnp.dot(x, wxo_ref[...], preferred_element_type=jnp.float32)
                  + jnp.dot(h, who_ref[...], preferred_element_type=jnp.float32)
                  + bo_ref[...])                                   # (B, O)
        m = jnp.max(logits, axis=1, keepdims=True)
        shifted = logits - m
        lse = jnp.log(jnp.sum(jnp.exp(shifted), axis=1, keepdims=True))
        out_ref[...] = (shifted - lse).astype(out_ref.dtype)

    # i2h update every step; written back into the resident hidden block.
    new_h = (jnp.dot(x, wxh_ref[...], preferred_element_type=jnp.float32)
             + jnp.dot(h, whh_ref[...], preferred_element_type=jnp.float32)
             + bh_ref[...])                                        # (B, H)
    hid_ref[...] = new_h.astype(hid_ref.dtype)


def rnn_forward(xs, h0, w_i2h, b_i2h, w_i2o, b_i2o):
    """Run the RNN over a whole sequence in a single pallas_call.

    xs:     (T, B, I)  float32 inputs per timestep
    h0:     (B, H)     initial hidden
    w_i2h:  (H, I+H)   PyTorch nn.Linear layout (out, in)
    b_i2h:  (H,)
    w_i2o:  (O, I+H)   PyTorch nn.Linear layout (out, in)
    b_i2o:  (O,)
    returns (log_probs_of_last_step (B, O), final_hidden (B, H))
    """
    T, B, I = xs.shape
    H = h0.shape[1]
    O = w_i2o.shape[0]

    # Transpose to (in, out) and split the concatenated input dim ONCE in the
    # wrapper, so the kernel never concatenates along the lane axis.
    w_i2h_t = jnp.asarray(w_i2h, jnp.float32).T    # (I+H, H)
    w_i2o_t = jnp.asarray(w_i2o, jnp.float32).T    # (I+H, O)
    wxh, whh = w_i2h_t[:I], w_i2h_t[I:]            # (I, H), (H, H)
    wxo, who = w_i2o_t[:I], w_i2o_t[I:]            # (I, O), (H, O)
    bh = jnp.asarray(b_i2h, jnp.float32).reshape(1, H)
    bo = jnp.asarray(b_i2o, jnp.float32).reshape(1, O)

    # Same block every grid step -> DMA'd once, resident in VMEM.
    resident = lambda shape: pl.BlockSpec(shape, lambda t: (0,) * len(shape))

    out_shapes = (
        jax.ShapeDtypeStruct((B, O), jnp.float32),
        jax.ShapeDtypeStruct((B, H), jnp.float32),
    )

    return pl.pallas_call(
        _rnn_seq_kernel,
        out_shape=out_shapes,
        grid=(T,),
        in_specs=[
            # Per-step input: time dim indexed by t and squeezed out.
            pl.BlockSpec((None, B, I), lambda t: (t, 0, 0)),
            resident((B, H)),                                       # h0
            resident((I, H)), resident((H, H)), resident((1, H)),   # i2h
            resident((I, O)), resident((H, O)), resident((1, O)),   # i2o
        ],
        out_specs=(resident((B, O)), resident((B, H))),
        compiler_params=pltpu.CompilerParams(
            dimension_semantics=("arbitrary",)),   # time steps carry the hidden state
    )(xs, h0, wxh, whh, bh, wxo, who, bo)


def rnn_cell(inp, hidden, w_i2h, b_i2h, w_i2o, b_i2o):
    """Single step with the exact module forward signature: (output, hidden')."""
    return rnn_forward(inp[None], hidden, w_i2h, b_i2h, w_i2o, b_i2o)


def init_params(key, input_size, hidden_size, output_size):
    """nn.Linear-style init in PyTorch layout: W (out, in), b (out,)."""
    comb = input_size + hidden_size
    k1, k2, k3, k4 = jax.random.split(key, 4)
    bound = 1.0 / jnp.sqrt(jnp.float32(comb))
    w_i2h = jax.random.uniform(k1, (hidden_size, comb), jnp.float32, -bound, bound)
    b_i2h = jax.random.uniform(k2, (hidden_size,), jnp.float32, -bound, bound)
    w_i2o = jax.random.uniform(k3, (output_size, comb), jnp.float32, -bound, bound)
    b_i2o = jax.random.uniform(k4, (output_size,), jnp.float32, -bound, bound)
    return w_i2h, b_i2h, w_i2o, b_i2o


def _ref_step(x, h, w_i2h, b_i2h, w_i2o, b_i2o):
    combined = jnp.concatenate([x, h], axis=1)
    logits = combined @ w_i2o.T + b_i2o
    out = jax.nn.log_softmax(logits, axis=1)
    h_new = combined @ w_i2h.T + b_i2h
    return out, h_new


if __name__ == "__main__":
    # Small shapes; batch=8 fills the sublanes (per perf review) but stays tiny.
    T, B, I, H, O = 12, 8, 16, 32, 8

    key = jax.random.PRNGKey(0)
    k_x, k_p = jax.random.split(key)

    xs = jax.random.normal(k_x, (T, B, I), jnp.float32)
    h0 = jnp.zeros((B, H), jnp.float32)            # initHidden, broadcast to batch

    w_i2h, b_i2h, w_i2o, b_i2o = init_params(k_p, I, H, O)

    # Fused sequence kernel (one pallas_call for all T steps).
    log_probs, h_final = rnn_forward(xs, h0, w_i2h, b_i2h, w_i2o, b_i2o)
    jax.block_until_ready((log_probs, h_final))

    # Pure-JAX reference loop over the same sequence.
    h_ref = h0
    out_ref_last = None
    for t in range(T):
        out_ref_last, h_ref = _ref_step(xs[t], h_ref, w_i2h, b_i2h, w_i2o, b_i2o)

    assert log_probs.shape == (B, O)
    assert h_final.shape == (B, H)
    assert jnp.allclose(log_probs, out_ref_last, atol=1e-4, rtol=1e-5)
    assert jnp.allclose(h_final, h_ref, atol=1e-4, rtol=1e-5)

    # Single-step path (exact module forward semantics).
    out1, h1 = rnn_cell(xs[0], h0, w_i2h, b_i2h, w_i2o, b_i2o)
    jax.block_until_ready((out1, h1))
    ref_out1, ref_h1 = _ref_step(xs[0], h0, w_i2h, b_i2h, w_i2o, b_i2o)
    assert jnp.allclose(out1, ref_out1, atol=1e-4, rtol=1e-5)
    assert jnp.allclose(h1, ref_h1, atol=1e-4, rtol=1e-5)

    print("KERNEL_OK")
</pallas_src>

<mosaic_0001>
module attributes {stable_mosaic.version = 11 : i64} {
  func.func @_rnn_seq_kernel(%arg0: i32, %arg1: memref<1x8x16xf32, #tpu.memory_space<vmem>>, %arg2: memref<8x32xf32, #tpu.memory_space<vmem>>, %arg3: memref<16x32xf32, #tpu.memory_space<vmem>>, %arg4: memref<32x32xf32, #tpu.memory_space<vmem>>, %arg5: memref<1x32xf32, #tpu.memory_space<vmem>>, %arg6: memref<16x8xf32, #tpu.memory_space<vmem>>, %arg7: memref<32x8xf32, #tpu.memory_space<vmem>>, %arg8: memref<1x8xf32, #tpu.memory_space<vmem>>, %arg9: memref<8x8xf32, #tpu.memory_space<vmem>>, %arg10: memref<8x32xf32, #tpu.memory_space<vmem>>) attributes {dimension_semantics = [#tpu.dimension_semantics<arbitrary>], iteration_bounds = array<i64: 12>, scalar_prefetch = 0 : i64, scratch_operands = 0 : i64, tpu.core_type = #tpu.core_type<tc>, window_params = [{transform_indices = @transform_0, window_bounds = array<i64: 1, 8, 16>}, {pipeline_mode = #tpu.pipeline_mode<synchronous>, transform_indices = @transform_1, window_bounds = array<i64: 8, 32>}, {pipeline_mode = #tpu.pipeline_mode<synchronous>, transform_indices = @transform_2, window_bounds = array<i64: 16, 32>}, {pipeline_mode = #tpu.pipeline_mode<synchronous>, transform_indices = @transform_3, window_bounds = array<i64: 32, 32>}, {pipeline_mode = #tpu.pipeline_mode<synchronous>, transform_indices = @transform_4, window_bounds = array<i64: 1, 32>}, {pipeline_mode = #tpu.pipeline_mode<synchronous>, transform_indices = @transform_5, window_bounds = array<i64: 16, 8>}, {pipeline_mode = #tpu.pipeline_mode<synchronous>, transform_indices = @transform_6, window_bounds = array<i64: 32, 8>}, {pipeline_mode = #tpu.pipeline_mode<synchronous>, transform_indices = @transform_7, window_bounds = array<i64: 1, 8>}, {pipeline_mode = #tpu.pipeline_mode<synchronous>, transform_indices = @transform_8, window_bounds = array<i64: 8, 8>}, {pipeline_mode = #tpu.pipeline_mode<synchronous>, transform_indices = @transform_9, window_bounds = array<i64: 8, 32>}]} {
    %c0_i32 = arith.constant 0 : i32
    %0 = arith.cmpi eq, %arg0, %c0_i32 : i32
    %1 = arith.extui %0 : i1 to i32
    %c0_i32_0 = arith.constant 0 : i32
    %2 = arith.cmpi ne, %1, %c0_i32_0 : i32
    scf.if %2 {
      %c0_15 = arith.constant 0 : index
      %c0_16 = arith.constant 0 : index
      %18 = vector.load %arg2[%c0_15, %c0_16] : memref<8x32xf32, #tpu.memory_space<vmem>>, vector<8x32xf32>
      %c0_17 = arith.constant 0 : index
      %c0_18 = arith.constant 0 : index
      %19 = vector.load %arg10[%c0_17, %c0_18] : memref<8x32xf32, #tpu.memory_space<vmem>>, vector<8x32xf32>
      tpu.vector_store %arg10[%c0_17, %c0_18], %18 {strides = array<i32>} : memref<8x32xf32, #tpu.memory_space<vmem>>, vector<8x32xf32>,
    } else {
    }
    %c0 = arith.constant 0 : index
    %c0_1 = arith.constant 0 : index
    %c0_2 = arith.constant 0 : index
    %3 = vector.load %arg1[%c0, %c0_1, %c0_2] : memref<1x8x16xf32, #tpu.memory_space<vmem>>, vector<1x8x16xf32>
    %4 = vector.shape_cast %3 : vector<1x8x16xf32> to vector<8x16xf32>
    %c0_3 = arith.constant 0 : index
    %c0_4 = arith.constant 0 : index
    %5 = vector.load %arg10[%c0_3, %c0_4] : memref<8x32xf32, #tpu.memory_space<vmem>>, vector<8x32xf32>
    %c11_i32 = arith.constant 11 : i32
    %6 = arith.cmpi eq, %arg0, %c11_i32 : i32
    %7 = arith.extui %6 : i1 to i32
    %c0_i32_5 = arith.constant 0 : i32
    %8 = arith.cmpi ne, %7, %c0_i32_5 : i32
    scf.if %8 {
      %c0_15 = arith.constant 0 : index
      %c0_16 = arith.constant 0 : index
      %18 = vector.load %arg6[%c0_15, %c0_16] : memref<16x8xf32, #tpu.memory_space<vmem>>, vector<16x8xf32>
      %cst_17 = arith.constant dense<0.000000e+00> : vector<8x8xf32>
      %19 = tpu.matmul %4, %18, %cst_17 {dimension_numbers = #tpu.dot_dimension_numbers<[1], [0], [0], [1], [0, 0, 1, 1], [], []>} : vector<8x16xf32>, vector<16x8xf32>, vector<8x8xf32> -> vector<8x8xf32>
      %c0_18 = arith.constant 0 : index
      %c0_19 = arith.constant 0 : index
      %20 = vector.load %arg7[%c0_18, %c0_19] : memref<32x8xf32, #tpu.memory_space<vmem>>, vector<32x8xf32>
      %cst_20 = arith.constant dense<0.000000e+00> : vector<8x8xf32>
      %21 = tpu.matmul %5, %20, %cst_20 {dimension_numbers = #tpu.dot_dimension_numbers<[1], [0], [0], [1], [0, 0, 1, 1], [], []>} : vector<8x32xf32>, vector<32x8xf32>, vector<8x8xf32> -> vector<8x8xf32>
      %22 = arith.addf %19, %21 : vector<8x8xf32>
      %c0_21 = arith.constant 0 : index
      %c0_22 = arith.constant 0 : index
      %23 = vector.load %arg8[%c0_21, %c0_22] : memref<1x8xf32, #tpu.memory_space<vmem>>, vector<1x8xf32>
      %24 = vector.broadcast %23 : vector<1x8xf32> to vector<8x8xf32>
      %25 = arith.addf %22, %24 : vector<8x8xf32>
      %cst_23 = arith.constant dense<0xFF800000> : vector<8xf32>
      %26 = vector.multi_reduction <maximumf>, %25, %cst_23 [1] : vector<8x8xf32> to vector<8xf32>
      %27 = vector.shape_cast %26 : vector<8xf32> to vector<8x1xf32>
      %28 = vector.broadcast %27 : vector<8x1xf32> to vector<8x8xf32>
      %29 = arith.subf %25, %28 : vector<8x8xf32>
      %30 = math.exp %29 : vector<8x8xf32>
      %cst_24 = arith.constant dense<0.000000e+00> : vector<8xf32>
      %31 = vector.multi_reduction <add>, %30, %cst_24 [1] : vector<8x8xf32> to vector<8xf32>
      %32 = vector.shape_cast %31 : vector<8xf32> to vector<8x1xf32>
      %33 = math.log %32 : vector<8x1xf32>
      %34 = vector.broadcast %33 : vector<8x1xf32> to vector<8x8xf32>
      %35 = arith.subf %29, %34 : vector<8x8xf32>
      %c0_25 = arith.constant 0 : index
      %c0_26 = arith.constant 0 : index
      %36 = vector.load %arg9[%c0_25, %c0_26] : memref<8x8xf32, #tpu.memory_space<vmem>>, vector<8x8xf32>
      tpu.vector_store %arg9[%c0_25, %c0_26], %35 {strides = array<i32>} : memref<8x8xf32, #tpu.memory_space<vmem>>, vector<8x8xf32>,
    } else {
    }
    %c0_6 = arith.constant 0 : index
    %c0_7 = arith.constant 0 : index
    %9 = vector.load %arg3[%c0_6, %c0_7] : memref<16x32xf32, #tpu.memory_space<vmem>>, vector<16x32xf32>
    %cst = arith.constant dense<0.000000e+00> : vector<8x32xf32>
    %10 = tpu.matmul %4, %9, %cst {dimension_numbers = #tpu.dot_dimension_numbers<[1], [0], [0], [1], [0, 0, 1, 1], [], []>} : vector<8x16xf32>, vector<16x32xf32>, vector<8x32xf32> -> vector<8x32xf32>
    %c0_8 = arith.constant 0 : index
    %c0_9 = arith.constant 0 : index
    %11 = vector.load %arg4[%c0_8, %c0_9] : memref<32x32xf32, #tpu.memory_space<vmem>>, vector<32x32xf32>
    %cst_10 = arith.constant dense<0.000000e+00> : vector<8x32xf32>
    %12 = tpu.matmul %5, %11, %cst_10 {dimension_numbers = #tpu.dot_dimension_numbers<[1], [0], [0], [1], [0, 0, 1, 1], [], []>} : vector<8x32xf32>, vector<32x32xf32>, vector<8x32xf32> -> vector<8x32xf32>
    %13 = arith.addf %10, %12 : vector<8x32xf32>
    %c0_11 = arith.constant 0 : index
    %c0_12 = arith.constant 0 : index
    %14 = vector.load %arg5[%c0_11, %c0_12] : memref<1x32xf32, #tpu.memory_space<vmem>>, vector<1x32xf32>
    %15 = vector.broadcast %14 : vector<1x32xf32> to vector<8x32xf32>
    %16 = arith.addf %13, %15 : vector<8x32xf32>
    %c0_13 = arith.constant 0 : index
    %c0_14 = arith.constant 0 : index
    %17 = vector.load %arg10[%c0_13, %c0_14] : memref<8x32xf32, #tpu.memory_space<vmem>>, vector<8x32xf32>
    tpu.vector_store %arg10[%c0_13, %c0_14], %16 {strides = array<i32>} : memref<8x32xf32, #tpu.memory_space<vmem>>, vector<8x32xf32>,
    return
  }
  func.func @transform_0(%arg0: i32) -> (i32, i32, i32) {
    %c0_i32 = arith.constant 0 : i32
    %c0_i32_0 = arith.constant 0 : i32
    %c0_i32_1 = arith.constant 0 : i32
    return %arg0, %c0_i32, %c0_i32_0 : i32, i32, i32
  }
  func.func @transform_1(%arg0: i32) -> (i32, i32) {
    %c0_i32 = arith.constant 0 : i32
    %c0_i32_0 = arith.constant 0 : i32
    %c0_i32_1 = arith.constant 0 : i32
    return %c0_i32, %c0_i32_0 : i32, i32
  }
  func.func @transform_2(%arg0: i32) -> (i32, i32) {
    %c0_i32 = arith.constant 0 : i32
    %c0_i32_0 = arith.constant 0 : i32
    %c0_i32_1 = arith.constant 0 : i32
    return %c0_i32, %c0_i32_0 : i32, i32
  }
  func.func @transform_3(%arg0: i32) -> (i32, i32) {
    %c0_i32 = arith.constant 0 : i32
    %c0_i32_0 = arith.constant 0 : i32
    %c0_i32_1 = arith.constant 0 : i32
    return %c0_i32, %c0_i32_0 : i32, i32
  }
  func.func @transform_4(%arg0: i32) -> (i32, i32) {
    %c0_i32 = arith.constant 0 : i32
    %c0_i32_0 = arith.constant 0 : i32
    %c0_i32_1 = arith.constant 0 : i32
    return %c0_i32, %c0_i32_0 : i32, i32
  }
  func.func @transform_5(%arg0: i32) -> (i32, i32) {
    %c0_i32 = arith.constant 0 : i32
    %c0_i32_0 = arith.constant 0 : i32
    %c0_i32_1 = arith.constant 0 : i32
    return %c0_i32, %c0_i32_0 : i32, i32
  }
  func.func @transform_6(%arg0: i32) -> (i32, i32) {
    %c0_i32 = arith.constant 0 : i32
    %c0_i32_0 = arith.constant 0 : i32
    %c0_i32_1 = arith.constant 0 : i32
    return %c0_i32, %c0_i32_0 : i32, i32
  }
  func.func @transform_7(%arg0: i32) -> (i32, i32) {
    %c0_i32 = arith.constant 0 : i32
    %c0_i32_0 = arith.constant 0 : i32
    %c0_i32_1 = arith.constant 0 : i32
    return %c0_i32, %c0_i32_0 : i32, i32
  }
  func.func @transform_8(%arg0: i32) -> (i32, i32) {
    %c0_i32 = arith.constant 0 : i32
    %c0_i32_0 = arith.constant 0 : i32
    %c0_i32_1 = arith.constant 0 : i32
    return %c0_i32, %c0_i32_0 : i32, i32
  }
  func.func @transform_9(%arg0: i32) -> (i32, i32) {
    %c0_i32 = arith.constant 0 : i32
    %c0_i32_0 = arith.constant 0 : i32
    %c0_i32_1 = arith.constant 0 : i32
    return %c0_i32, %c0_i32_0 : i32, i32
  }
}

</mosaic_0001>

<llo_original>
// kernel: tpu_custom_call.1
$region0: #{tpu_custom_call.1}
  #allocation0 [shape = 'u32[]', space=smem, size = 0x4, offset = 0x4, fixed_abs, tag = 'smem constant byte address 0x4 - core index']
  #allocation1 [shape = 'u32[144,128]{1,0:T(1,128)}', space=vmem, size = 0x12000, scoped, tag = 'internal scratch']
  %s0 = inlined_call_operand.hbm [shape: f32[12,8,16], index: 0, kind: input, shape index: {}]
  %s1 = inlined_call_operand.vmem [shape: f32[8,32], index: 1, kind: input, shape index: {}]
  %s2 = inlined_call_operand.vmem [shape: f32[16,32], index: 2, kind: input, shape index: {}]
  %s3 = inlined_call_operand.vmem [shape: f32[32,32], index: 3, kind: input, shape index: {}]
  %s4 = inlined_call_operand.vmem [shape: f32[1,32], index: 4, kind: input, shape index: {}]
  %s5 = inlined_call_operand.vmem [shape: f32[16,8], index: 5, kind: input, shape index: {}]
  %s6 = inlined_call_operand.vmem [shape: f32[32,8], index: 6, kind: input, shape index: {}]
  %s7 = inlined_call_operand.vmem [shape: f32[1,8], index: 7, kind: input, shape index: {}]
  %s8 = inlined_call_operand.hbm [shape: f32[8,8], index: 8, kind: output, shape index: {0}]
  %s9 = inlined_call_operand.hbm [shape: f32[8,32], index: 9, kind: output, shape index: {1}]
  %10 = xla_tuple %s8, %s9
  %s11 = sld [smem:[#allocation0]]
  $region85: #{tpu_custom_call.1} parent=0
    _
  %s13 = ssub.s32 1, %s11
  %s14 = scalar_select 0, %s13, %s11
  $region1: #{tpu_custom_call.1} parent=0
    #allocation2 [shape = 'u8[8192]{0}', space=vmem, size = 0x2000, scoped, tag = 'input window, operand 0']
    #allocation3 [shape = 's32[2]{0}', space=sflag, size = 0x8, scoped, tag = 'scoped memory for tpu_custom_call.1']
    #allocation4 [shape = 's32[2]{0}', space=sflag, size = 0x8, scoped, tag = 'scoped memory for tpu_custom_call.1']
    #allocation5 [shape = 'u8[4096]{0}', space=vmem, size = 0x1000, scoped, tag = 'output window, operand 0, single buffered']
    #allocation6 [shape = 'u8[4096]{0}', space=vmem, size = 0x1000, scoped, tag = 'output window, operand 1, single buffered']
    #allocation7 [shape = 's32[1]{0}', space=sflag, size = 0x4, scoped, tag = 'scoped memory for tpu_custom_call.1']
    %15 = vsyncpa [#allocation3], 0
    %s16 = scalar_lea.sflag [#allocation3], 1
    %17 = vsyncpa %s16, 0
    %18 = vsyncpa [#allocation4], 0
    %19 = vsyncpa [#allocation7], 0
    loop: start=0, step=1, limit=14
    $region2: #{tpu_custom_call.1} parent=1 // loop_pre_header
      _
    $region3: #{tpu_custom_call.1} parent=1 // loop_header
      %s21 = sphi 0, %s25
      %p22 = scmp.ge.s32.totalorder %s21, 14
      %s31 = sphi 0, %s33
      %s34 = sphi 0, %s31
      %s35 = sphi 0, %s34
      %s51 = sphi 0, %s35
      %s55 = sphi 0, %s55
      %s57 = sphi 0, %s55
      %s58 = sphi 0, %s57
      %s72 = sphi 0, %s58
      %s76 = sphi 0, %s76
      %s78 = sphi 0, %s76
      %s79 = sphi 0, %s78
      %s93 = sphi 0, %s79
      %s97 = sphi 0, %s97
      %s99 = sphi 0, %s97
      %s100 = sphi 0, %s99
      %s114 = sphi 0, %s100
      %s118 = sphi 0, %s118
      %s120 = sphi 0, %s118
      %s121 = sphi 0, %s120
      %s135 = sphi 0, %s121
      %s139 = sphi 0, %s139
      %s141 = sphi 0, %s139
      %s142 = sphi 0, %s141
      %s156 = sphi 0, %s142
      %s160 = sphi 0, %s160
      %s162 = sphi 0, %s160
      %s163 = sphi 0, %s162
      %s177 = sphi 0, %s163
      %s181 = sphi 0, %s181
      %s183 = sphi 0, %s181
      %s184 = sphi 0, %s183
      %s198 = sphi 0, %s184
      %s202 = sphi 0, %s202
      %s204 = sphi 0, %s202
      %s205 = sphi 0, %s204
      %s219 = sphi 0, %s205
      %s223 = sphi 0, %s223
      %s225 = sphi 0, %s223
      %s226 = sphi 0, %s225
      %s240 = sphi 0, %s226
    $region4: #{tpu_custom_call.1} parent=1 // loop_header_branch
      %24 = sbr.rel (%p22) target = $region8
    $region5: #{tpu_custom_call.1} parent=1 // loop_body
      %s26 = ssub.s32 %s21, 1
      %s27 = ssub.s32 %s21, 2
      %s28 = sadd.s32 %s21, 1
      %s29 = ssub.s32 %s21, %s28
      %p30 = scmp.eq.s32.totalorder %s29, 0
      %s32 = sadd.s32 %s31, 1
      %s33 = scalar_select %p30, %s31, %s32
      %p36 = pneg %p30
      %p37 = scmp.eq.s32.totalorder %s21, 11
      %p38 = por %p36, %p37
      %p39 = scmp.ne.s32.totalorder %s31, %s34
      %p40 = scmp.eq.s32.totalorder %s21, 0
      %p41 = por %p39, %p40
      %p42 = scmp.ne.s32.totalorder %s31, %s34
      %p43 = scmp.eq.s32.totalorder %s26, 11
      %p44 = por %p42, %p43
      %p45 = scmp.ne.s32.totalorder %s34, %s35
      %p46 = scmp.eq.s32.totalorder %s26, 0
      %p47 = por %p45, %p46
      %p48 = scmp.ne.s32.totalorder %s34, %s35
      %p49 = scmp.eq.s32.totalorder %s27, 11
      %p50 = por %p48, %p49
      %p52 = scmp.ne.s32.totalorder %s35, %s51
      %p53 = scmp.eq.s32.totalorder %s27, 0
      %p54 = por %p52, %p53
      %s56 = sadd.s32 %s55, 1
      %p59 = scmp.eq.s32.totalorder %s21, 11
      %p60 = scmp.ne.s32.totalorder %s55, %s57
      %p61 = scmp.eq.s32.totalorder %s21, 0
      %p62 = por %p60, %p61
      %p63 = scmp.ne.s32.totalorder %s55, %s57
      %p64 = scmp.eq.s32.totalorder %s26, 11
      %p65 = por %p63, %p64
      %p66 = scmp.ne.s32.totalorder %s57, %s58
      %p67 = scmp.eq.s32.totalorder %s26, 0
      %p68 = por %p66, %p67
      %p69 = scmp.ne.s32.totalorder %s57, %s58
      %p70 = scmp.eq.s32.totalorder %s27, 11
      %p71 = por %p69, %p70
      %p73 = scmp.ne.s32.totalorder %s58, %s72
      %p74 = scmp.eq.s32.totalorder %s27, 0
      %p75 = por %p73, %p74
      %s77 = sadd.s32 %s76, 1
      %p80 = scmp.eq.s32.totalorder %s21, 11
      %p81 = scmp.ne.s32.totalorder %s76, %s78
      %p82 = scmp.eq.s32.totalorder %s21, 0
      %p83 = por %p81, %p82
      %p84 = scmp.ne.s32.totalorder %s76, %s78
      %p85 = scmp.eq.s32.totalorder %s26, 11
      %p86 = por %p84, %p85
      %p87 = scmp.ne.s32.totalorder %s78, %s79
      %p88 = scmp.eq.s32.totalorder %s26, 0
      %p89 = por %p87, %p88
      %p90 = scmp.ne.s32.totalorder %s78, %s79
      %p91 = scmp.eq.s32.totalorder %s27, 11
      %p92 = por %p90, %p91
      %p94 = scmp.ne.s32.totalorder %s79, %s93
      %p95 = scmp.eq.s32.totalorder %s27, 0
      %p96 = por %p94, %p95
      %s98 = sadd.s32 %s97, 1
      %p101 = scmp.eq.s32.totalorder %s21, 11
      %p102 = scmp.ne.s32.totalorder %s97, %s99
      %p103 = scmp.eq.s32.totalorder %s21, 0
      %p104 = por %p102, %p103
      %p105 = scmp.ne.s32.totalorder %s97, %s99
      %p106 = scmp.eq.s32.totalorder %s26, 11
      %p107 = por %p105, %p106
      %p108 = scmp.ne.s32.totalorder %s99, %s100
      %p109 = scmp.eq.s32.totalorder %s26, 0
      %p110 = por %p108, %p109
      %p111 = scmp.ne.s32.totalorder %s99, %s100
      %p112 = scmp.eq.s32.totalorder %s27, 11
      %p113 = por %p111, %p112
      %p115 = scmp.ne.s32.totalorder %s100, %s114
      %p116 = scmp.eq.s32.totalorder %s27, 0
      %p117 = por %p115, %p116
      %s119 = sadd.s32 %s118, 1
      %p122 = scmp.eq.s32.totalorder %s21, 11
      %p123 = scmp.ne.s32.totalorder %s118, %s120
      %p124 = scmp.eq.s32.totalorder %s21, 0
      %p125 = por %p123, %p124
      %p126 = scmp.ne.s32.totalorder %s118, %s120
      %p127 = scmp.eq.s32.totalorder %s26, 11
      %p128 = por %p126, %p127
      %p129 = scmp.ne.s32.totalorder %s120, %s121
      %p130 = scmp.eq.s32.totalorder %s26, 0
      %p131 = por %p129, %p130
      %p132 = scmp.ne.s32.totalorder %s120, %s121
      %p133 = scmp.eq.s32.totalorder %s27, 11
      %p134 = por %p132, %p133
      %p136 = scmp.ne.s32.totalorder %s121, %s135
      %p137 = scmp.eq.s32.totalorder %s27, 0
      %p138 = por %p136, %p137
      %s140 = sadd.s32 %s139, 1
      %p143 = scmp.eq.s32.totalorder %s21, 11
      %p144 = scmp.ne.s32.totalorder %s139, %s141
      %p145 = scmp.eq.s32.totalorder %s21, 0
      %p146 = por %p144, %p145
      %p147 = scmp.ne.s32.totalorder %s139, %s141
      %p148 = scmp.eq.s32.totalorder %s26, 11
      %p149 = por %p147, %p148
      %p150 = scmp.ne.s32.totalorder %s141, %s142
      %p151 = scmp.eq.s32.totalorder %s26, 0
      %p152 = por %p150, %p151
      %p153 = scmp.ne.s32.totalorder %s141, %s142
      %p154 = scmp.eq.s32.totalorder %s27, 11
      %p155 = por %p153, %p154
      %p157 = scmp.ne.s32.totalorder %s142, %s156
      %p158 = scmp.eq.s32.totalorder %s27, 0
      %p159 = por %p157, %p158
      %s161 = sadd.s32 %s160, 1
      %p164 = scmp.eq.s32.totalorder %s21, 11
      %p165 = scmp.ne.s32.totalorder %s160, %s162
      %p166 = scmp.eq.s32.totalorder %s21, 0
      %p167 = por %p165, %p166
      %p168 = scmp.ne.s32.totalorder %s160, %s162
      %p169 = scmp.eq.s32.totalorder %s26, 11
      %p170 = por %p168, %p169
      %p171 = scmp.ne.s32.totalorder %s162, %s163
      %p172 = scmp.eq.s32.totalorder %s26, 0
      %p173 = por %p171, %p172
      %p174 = scmp.ne.s32.totalorder %s162, %s163
      %p175 = scmp.eq.s32.totalorder %s27, 11
      %p176 = por %p174, %p175
      %p178 = scmp.ne.s32.totalorder %s163, %s177
      %p179 = scmp.eq.s32.totalorder %s27, 0
      %p180 = por %p178, %p179
      %s182 = sadd.s32 %s181, 1
      %p185 = scmp.eq.s32.totalorder %s21, 11
      %p186 = scmp.ne.s32.totalorder %s181, %s183
      %p187 = scmp.eq.s32.totalorder %s21, 0
      %p188 = por %p186, %p187
      %p189 = scmp.ne.s32.totalorder %s181, %s183
      %p190 = scmp.eq.s32.totalorder %s26, 11
      %p191 = por %p189, %p190
      %p192 = scmp.ne.s32.totalorder %s183, %s184
      %p193 = scmp.eq.s32.totalorder %s26, 0
      %p194 = por %p192, %p193
      %p195 = scmp.ne.s32.totalorder %s183, %s184
      %p196 = scmp.eq.s32.totalorder %s27, 11
      %p197 = por %p195, %p196
      %p199 = scmp.ne.s32.totalorder %s184, %s198
      %p200 = scmp.eq.s32.totalorder %s27, 0
      %p201 = por %p199, %p200
      %s203 = sadd.s32 %s202, 1
      %p206 = scmp.eq.s32.totalorder %s21, 11
      %p207 = scmp.ne.s32.totalorder %s202, %s204
      %p208 = scmp.eq.s32.totalorder %s21, 0
      %p209 = por %p207, %p208
      %p210 = scmp.ne.s32.totalorder %s202, %s204
      %p211 = scmp.eq.s32.totalorder %s26, 11
      %p212 = por %p210, %p211
      %p213 = scmp.ne.s32.totalorder %s204, %s205
      %p214 = scmp.eq.s32.totalorder %s26, 0
      %p215 = por %p213, %p214
      %p216 = scmp.ne.s32.totalorder %s204, %s205
      %p217 = scmp.eq.s32.totalorder %s27, 11
      %p218 = por %p216, %p217
      %p220 = scmp.ne.s32.totalorder %s205, %s219
      %p221 = scmp.eq.s32.totalorder %s27, 0
      %p222 = por %p220, %p221
      %s224 = sadd.s32 %s223, 1
      %p227 = scmp.eq.s32.totalorder %s21, 11
      %p228 = scmp.ne.s32.totalorder %s223, %s225
      %p229 = scmp.eq.s32.totalorder %s21, 0
      %p230 = por %p228, %p229
      %p231 = scmp.ne.s32.totalorder %s223, %s225
      %p232 = scmp.eq.s32.totalorder %s26, 11
      %p233 = por %p231, %p232
      %p234 = scmp.ne.s32.totalorder %s225, %s226
      %p235 = scmp.eq.s32.totalorder %s26, 0
      %p236 = por %p234, %p235
      %p237 = scmp.ne.s32.totalorder %s225, %s226
      %p238 = scmp.eq.s32.totalorder %s27, 11
      %p239 = por %p237, %p238
      %p241 = scmp.ne.s32.totalorder %s226, %s240
      %p242 = scmp.eq.s32.totalorder %s27, 0
      %p243 = por %p241, %p242
      %p244 = scmp.le.s32.totalorder 1, %s21
      %p245 = scmp.lt.s32.totalorder %s21, 13
      %p246 = pnand %p244, %p245
      %p247 = pneg %p246
      // Predicated region
      $region9: #{tpu_custom_call.1} parent=5 // pred_check
        _
      $region10: #{tpu_custom_call.1} parent=5 // pred_check_branch
        %249 = sbr.rel (%p246) target = $region12
      $region11: #{tpu_custom_call.1} parent=5 // pred_region
        %s250 = ssub.s32 %s21, 1
        // Predicated region
        $region13: #{tpu_custom_call.1} parent=11 // pred_check
          %p251 = pneg %p68
        $region14: #{tpu_custom_call.1} parent=11 // pred_check_branch
          %253 = sbr.rel (%p251) target = $region16
        $region15: #{tpu_custom_call.1} parent=11 // pred_region
          _
        $region16: #{tpu_custom_call.1} parent=11 // pred_fallthru
          _
        // Predicated region
        $region17: #{tpu_custom_call.1} parent=11 // pred_check
          %p254 = pneg %p89
        $region18: #{tpu_custom_call.1} parent=11 // pred_check_branch
          %256 = sbr.rel (%p254) target = $region20
        $region19: #{tpu_custom_call.1} parent=11 // pred_region
          _
        $region20: #{tpu_custom_call.1} parent=11 // pred_fallthru
          _
        // Predicated region
        $region21: #{tpu_custom_call.1} parent=11 // pred_check
          %p257 = pneg %p110
        $region22: #{tpu_custom_call.1} parent=11 // pred_check_branch
          %259 = sbr.rel (%p257) target = $region24
        $region23: #{tpu_custom_call.1} parent=11 // pred_region
          _
        $region24: #{tpu_custom_call.1} parent=11 // pred_fallthru
          _
        // Predicated region
        $region25: #{tpu_custom_call.1} parent=11 // pred_check
          %p260 = pneg %p131
        $region26: #{tpu_custom_call.1} parent=11 // pred_check_branch
          %262 = sbr.rel (%p260) target = $region28
        $region27: #{tpu_custom_call.1} parent=11 // pred_region
          _
        $region28: #{tpu_custom_call.1} parent=11 // pred_fallthru
          _
        // Predicated region
        $region29: #{tpu_custom_call.1} parent=11 // pred_check
          %p263 = pneg %p152
        $region30: #{tpu_custom_call.1} parent=11 // pred_check_branch
          %265 = sbr.rel (%p263) target = $region32
        $region31: #{tpu_custom_call.1} parent=11 // pred_region
          _
        $region32: #{tpu_custom_call.1} parent=11 // pred_fallthru
          _
        // Predicated region
        $region33: #{tpu_custom_call.1} parent=11 // pred_check
          %p266 = pneg %p173
        $region34: #{tpu_custom_call.1} parent=11 // pred_check_branch
          %268 = sbr.rel (%p266) target = $region36
        $region35: #{tpu_custom_call.1} parent=11 // pred_region
          _
        $region36: #{tpu_custom_call.1} parent=11 // pred_fallthru
          _
        // Predicated region
        $region37: #{tpu_custom_call.1} parent=11 // pred_check
          %p269 = pneg %p194
        $region38: #{tpu_custom_call.1} parent=11 // pred_check_branch
          %271 = sbr.rel (%p269) target = $region40
        $region39: #{tpu_custom_call.1} parent=11 // pred_region
          _
        $region40: #{tpu_custom_call.1} parent=11 // pred_fallthru
          _
      $region12: #{tpu_custom_call.1} parent=5 // pred_fallthru
        _
      %p272 = scmp.lt.s32.totalorder %s21, 12
      // Predicated region
      $region41: #{tpu_custom_call.1} parent=5 // pred_check
        %p273 = pneg %p272
      $region42: #{tpu_custom_call.1} parent=5 // pred_check_branch
        %275 = sbr.rel (%p273) target = $region44
      $region43: #{tpu_custom_call.1} parent=5 // pred_region
        // Predicated region
        $region45: #{tpu_custom_call.1} parent=43 // pred_check
          %p276 = pneg %p41
        $region46: #{tpu_custom_call.1} parent=43 // pred_check_branch
          %278 = sbr.rel (%p276) target = $region48
        $region47: #{tpu_custom_call.1} parent=43 // pred_region
          %s279 = sand.u32 %s31, 1
          %s280 = scalar_lea.sflag [#allocation3], %s279
          %s281 = sand.u32 %s31, 1
          %s282 = smul.addr %s281, 8
          %s283 = scalar_lea.vmem [#allocation2], %s282
          %s285 = ssub.s32 128, 128
          %286 = vsyncadd %s280, %s285
          %s287 = smul.addr %s21, 128
          %s288 = scalar_lea.hbm %s0, %s287
          %s290 = sshll.u32 %s283, 4
          %s291 = int_to_ptr.vmem [resolvable:$true] %s290
          %293 = dma.hbm_to_vmem [thread:$0]  %s288, 128, %s291, %s280
        $region48: #{tpu_custom_call.1} parent=43 // pred_fallthru
          _
      $region44: #{tpu_custom_call.1} parent=5 // pred_fallthru
        _
      %p294 = scmp.le.s32.totalorder 1, %s21
      %p295 = scmp.lt.s32.totalorder %s21, 13
      %p296 = pnand %p294, %p295
      %p297 = pneg %p296
      // Predicated region
      $region49: #{tpu_custom_call.1} parent=5 // pred_check
        _
      $region50: #{tpu_custom_call.1} parent=5 // pred_check_branch
        %299 = sbr.rel (%p296) target = $region52
      $region51: #{tpu_custom_call.1} parent=5 // pred_region
        %s300 = ssub.s32 %s21, 1
        %s301 = sand.u32 %s34, 1
        %s302 = scalar_lea.sflag [#allocation3], %s301
        %s303 = sand.u32 %s34, 1
        %s304 = smul.addr %s303, 8
        %s305 = scalar_lea.vmem [#allocation2], %s304
        // Predicated region
        $region53: #{tpu_custom_call.1} parent=51 // pred_check
          %p306 = pneg %p47
        $region54: #{tpu_custom_call.1} parent=51 // pred_check_branch
          %308 = sbr.rel (%p306) target = $region56
        $region55: #{tpu_custom_call.1} parent=51 // pred_region
          %309 = dma.done %s302, 128
        $region56: #{tpu_custom_call.1} parent=51 // pred_fallthru
          _
        %s310 = sand.u32 %s34, 1
        %s311 = scalar_lea.sflag [#allocation3], %s310
        %s312 = sand.u32 %s34, 1
        %s313 = smul.addr %s312, 8
        %s314 = scalar_lea.vmem [#allocation2], %s313
        %p315 = pneg %p47
        %p316 = pneg %p44
        %p317 = pneg %p68
        %p318 = pneg %p65
        %p319 = pneg %p89
        %p320 = pneg %p86
        %p321 = pneg %p110
        %p322 = pneg %p107
        %p323 = pneg %p131
        %p324 = pneg %p128
        %p325 = pneg %p152
        %p326 = pneg %p149
        %p327 = pneg %p173
        %p328 = pneg %p170
        %p329 = pneg %p194
        %p330 = pneg %p191
        %p331 = pneg %p215
        %p332 = pneg %p212
        %p333 = pneg %p236
        %p334 = pneg %p233
        %p335 = scmp.eq.s32.totalorder %s26, 0
        // Predicated region
        $region57: #{tpu_custom_call.1} parent=51 // pred_check
          %p336 = pneg %p335
        $region58: #{tpu_custom_call.1} parent=51 // pred_check_branch
          %338 = sbr.rel (%p336) target = $region60
        $region59: #{tpu_custom_call.1} parent=51 // pred_region
          %v339 = vld [vmem:[%s1] sm:$0xff]
          %vm340 = vcmask 261120
          %341 = vst.msk [vmem:[#allocation6] sm:$0xff] %vm340, %v339
        $region60: #{tpu_custom_call.1} parent=51 // pred_fallthru
          _
        %v342 = vld [vmem:[%s305] sm:$0xff]
        %v343 = vld [vmem:[#allocation6] sm:$0xff]
        %p344 = scmp.eq.s32.totalorder %s26, 11
        // Predicated region
        $region61: #{tpu_custom_call.1} parent=51 // pred_check
          %p345 = pneg %p344
        $region62: #{tpu_custom_call.1} parent=51 // pred_check_branch
          %347 = sbr.rel (%p345) target = $region64
        $region63: #{tpu_custom_call.1} parent=51 // pred_region
          %v348 = vld [vmem:[%s5] sm:$0xff]
          %v349 = vld [vmem:[%s5 + $0x8] sm:$0xff]
          %v350 = vld [vmem:[%s6] sm:$0xff]
          %v351 = vld [vmem:[%s6 + $0x8] sm:$0xff]
          %v352 = vld [vmem:[%s6 + $0x10] sm:$0xff]
          %v353 = vld [vmem:[%s6 + $0x18] sm:$0xff]
          %vm354 = vcmask 261120
          %v356 = vsel %vm354, %v343, 0
          %358 = vmatprep.subr.mxu0 0.0
          %359 = vmatpush1.msra.mxu0 0.0
          %360 = vmatprep.subr.mxu0 0.0
          %361 = vmatpush1.msra.mxu0 0.0
          %362 = vmatprep.subr.mxu0 0.0
          %363 = vmatpush1.msra.mxu0 0.0
          %364 = vmatprep.subr.mxu0 0.0
          %365 = vmatpush1.msra.mxu0 0.0
          %366 = vmatprep.subr.mxu0 0.0
          %367 = vmatpush1.msra.mxu0 0.0
          %368 = vmatprep.subr.mxu0 0.0
          %369 = vmatpush1.msra.mxu0 0.0
          %370 = vmatprep.subr.mxu0 0.0
          %371 = vmatpush1.msra.mxu0 0.0
          %372 = vmatprep.subr.mxu0 0.0
          %373 = vmatpush1.msra.mxu0 0.0
          %374 = vmatprep.subr.mxu0 0.0
          %375 = vmatpush1.msra.mxu0 0.0
          %376 = vmatprep.subr.mxu0 0.0
          %377 = vmatpush1.msra.mxu0 0.0
          %378 = vmatprep.subr.mxu0 0.0
          %379 = vmatpush1.msra.mxu0 0.0
          %380 = vmatprep.subr.mxu0 0.0
          %381 = vmatpush1.msra.mxu0 0.0
          %382 = vmatprep.subr.mxu0 0.0
          %383 = vmatpush1.msra.mxu0 %v353
          %384 = vmatprep.subr.mxu0 0.0
          %385 = vmatpush1.msra.mxu0 %v352
          %386 = vmatprep.subr.mxu0 0.0
          %387 = vmatpush1.msra.mxu0 %v351
          %388 = vmatprep.subr.mxu0 0.0
          %389 = vmatpush1.msra.mxu0 %v350
          %390 = vmatprep.subr.mxu0 0.0
          %391 = vmatpush2.msra.mxu0 0.0
          %392 = vmatprep.subr.mxu0 0.0
          %393 = vmatpush2.msra.mxu0 0.0
          %394 = vmatprep.subr.mxu0 0.0
          %395 = vmatpush2.msra.mxu0 0.0
          %396 = vmatprep.subr.mxu0 0.0
          %397 = vmatpush2.msra.mxu0 0.0
          %398 = vmatprep.subr.mxu0 0.0
          %399 = vmatpush2.msra.mxu0 0.0
          %400 = vmatprep.subr.mxu0 0.0
          %401 = vmatpush2.msra.mxu0 0.0
          %402 = vmatprep.subr.mxu0 0.0
          %403 = vmatpush2.msra.mxu0 0.0
          %404 = vmatprep.subr.mxu0 0.0
          %405 = vmatpush2.msra.mxu0 0.0
          %406 = vmatprep.subr.mxu0 0.0
          %407 = vmatpush2.msra.mxu0 0.0
          %408 = vmatprep.subr.mxu0 0.0
          %409 = vmatpush2.msra.mxu0 0.0
          %410 = vmatprep.subr.mxu0 0.0
          %411 = vmatpush2.msra.mxu0 0.0
          %412 = vmatprep.subr.mxu0 0.0
          %413 = vmatpush2.msra.mxu0 0.0
          %414 = vmatprep.subr.mxu0 0.0
          %415 = vmatpush2.msra.mxu0 0.0
          %416 = vmatprep.subr.mxu0 0.0
          %417 = vmatpush2.msra.mxu0 0.0
          %418 = vmatprep.subr.mxu0 0.0
          %419 = vmatpush2.msra.mxu0 0.0
          %420 = vmatprep.subr.mxu0 0.0
          %421 = vmatpush2.msra.mxu0 0.0
          %422 = vmatprep.mubr.f32.mxu0 0.0
          %423 = vmatmul.mubr.f32.gmra.mxu0 %v356
          %v424 = vpop.f32.mrf.mxu0
          %v425 = vadd.f32 0.0, %v424
          %v426 = vpop.f32.mrf.mxu0
          %427 = vdwg.mxu0
          %vm428 = vcmask 130048
          %v430 = vsel %vm428, %v342, 0
          %432 = vmatprep.subr.mxu0 0.0
          %433 = vmatpush1.msra.mxu0 0.0
          %434 = vmatprep.subr.mxu0 0.0
          %435 = vmatpush1.msra.mxu0 0.0
          %436 = vmatprep.subr.mxu0 0.0
          %437 = vmatpush1.msra.mxu0 0.0
          %438 = vmatprep.subr.mxu0 0.0
          %439 = vmatpush1.msra.mxu0 0.0
          %440 = vmatprep.subr.mxu0 0.0
          %441 = vmatpush1.msra.mxu0 0.0
          %442 = vmatprep.subr.mxu0 0.0
          %443 = vmatpush1.msra.mxu0 0.0
          %444 = vmatprep.subr.mxu0 0.0
          %445 = vmatpush1.msra.mxu0 0.0
          %446 = vmatprep.subr.mxu0 0.0
          %447 = vmatpush1.msra.mxu0 0.0
          %448 = vmatprep.subr.mxu0 0.0
          %449 = vmatpush1.msra.mxu0 0.0
          %450 = vmatprep.subr.mxu0 0.0
          %451 = vmatpush1.msra.mxu0 0.0
          %452 = vmatprep.subr.mxu0 0.0
          %453 = vmatpush1.msra.mxu0 0.0
          %454 = vmatprep.subr.mxu0 0.0
          %455 = vmatpush1.msra.mxu0 0.0
          %456 = vmatprep.subr.mxu0 0.0
          %457 = vmatpush1.msra.mxu0 0.0
          %458 = vmatprep.subr.mxu0 0.0
          %459 = vmatpush1.msra.mxu0 0.0
          %460 = vmatprep.subr.mxu0 0.0
          %461 = vmatpush1.msra.mxu0 %v349
          %462 = vmatprep.subr.mxu0 0.0
          %463 = vmatpush1.msra.mxu0 %v348
          %464 = vmatprep.subr.mxu0 0.0
          %465 = vmatpush2.msra.mxu0 0.0
          %466 = vmatprep.subr.mxu0 0.0
          %467 = vmatpush2.msra.mxu0 0.0
          %468 = vmatprep.subr.mxu0 0.0
          %469 = vmatpush2.msra.mxu0 0.0
          %470 = vmatprep.subr.mxu0 0.0
          %471 = vmatpush2.msra.mxu0 0.0
          %472 = vmatprep.subr.mxu0 0.0
          %473 = vmatpush2.msra.mxu0 0.0
          %474 = vmatprep.subr.mxu0 0.0
          %475 = vmatpush2.msra.mxu0 0.0
          %476 = vmatprep.subr.mxu0 0.0
          %477 = vmatpush2.msra.mxu0 0.0
          %478 = vmatprep.subr.mxu0 0.0
          %479 = vmatpush2.msra.mxu0 0.0
          %480 = vmatprep.subr.mxu0 0.0
          %481 = vmatpush2.msra.mxu0 0.0
          %482 = vmatprep.subr.mxu0 0.0
          %483 = vmatpush2.msra.mxu0 0.0
          %484 = vmatprep.subr.mxu0 0.0
          %485 = vmatpush2.msra.mxu0 0.0
          %486 = vmatprep.subr.mxu0 0.0
          %487 = vmatpush2.msra.mxu0 0.0
          %488 = vmatprep.subr.mxu0 0.0
          %489 = vmatpush2.msra.mxu0 0.0
          %490 = vmatprep.subr.mxu0 0.0
          %491 = vmatpush2.msra.mxu0 0.0
          %492 = vmatprep.subr.mxu0 0.0
          %493 = vmatpush2.msra.mxu0 0.0
          %494 = vmatprep.subr.mxu0 0.0
          %495 = vmatpush2.msra.mxu0 0.0
          %496 = vmatprep.mubr.f32.mxu0 0.0
          %497 = vmatmul.mubr.f32.gmra.mxu0 %v430
          %v498 = vpop.f32.mrf.mxu0
          %v499 = vadd.f32 %v425, %v498
          %v500 = vpop.f32.mrf.mxu0
          %501 = vdwg.mxu0
          %v502 = vld [vmem:[%s7] sm:$0x1]
          %v504 = vlaneseq
          %v505 = vshrl.u32 %v504, 7
          %v506 = vsub.s32 0, %v505
          %v507 = vrot.slane %v502, %v506
          %v509 = vadd.f32 %v499, %v507
          %vm510 = vcmask 64512
          %v511 = vsel %vm510, %v509, -inf
          %512 = vmax.xlane.f32.xlu0 %v511
          %v513 = vpop.xlane.xlu0 %512
          %v514 = vsub.f32 %v509, %v513
          %v515 = vmul.f32 %v514, 1.442695
          %v516 = vpow.pop %v515
          %v517 = vsel %vm510, %v516, 0.0
          %518 = vadd.xlane.f32.xlu0 %v517
          %v519 = vpop.xlane.xlu0 %518
          %v520 = vlog2.pop %v519
          %v521 = vmul.f32 %v520, 0.6931472
          %v522 = vsub.f32 %v514, %v521
          %523 = vst.msk [vmem:[#allocation5] sm:$0xff] %vm510, %v522
        $region64: #{tpu_custom_call.1} parent=51 // pred_fallthru
          _
        %v524 = vld [vmem:[%s2] sm:$0xff]
        %v525 = vld [vmem:[%s2 + $0x8] sm:$0xff]
        %v526 = vld [vmem:[%s3] sm:$0xff]
        %v527 = vld [vmem:[%s3 + $0x8] sm:$0xff]
        %v528 = vld [vmem:[%s3 + $0x10] sm:$0xff]
        %v529 = vld [vmem:[%s3 + $0x18] sm:$0xff]
        %vm530 = vcmask 261120
        %v532 = vsel %vm530, %v343, 0
        %534 = vmatprep.subr.mxu0 0.0
        %535 = vmatpush1.msra.mxu0 0.0
        %536 = vmatprep.subr.mxu0 0.0
        %537 = vmatpush1.msra.mxu0 0.0
        %538 = vmatprep.subr.mxu0 0.0
        %539 = vmatpush1.msra.mxu0 0.0
        %540 = vmatprep.subr.mxu0 0.0
        %541 = vmatpush1.msra.mxu0 0.0
        %542 = vmatprep.subr.mxu0 0.0
        %543 = vmatpush1.msra.mxu0 0.0
        %544 = vmatprep.subr.mxu0 0.0
        %545 = vmatpush1.msra.mxu0 0.0
        %546 = vmatprep.subr.mxu0 0.0
        %547 = vmatpush1.msra.mxu0 0.0
        %548 = vmatprep.subr.mxu0 0.0
        %549 = vmatpush1.msra.mxu0 0.0
        %550 = vmatprep.subr.mxu0 0.0
        %551 = vmatpush1.msra.mxu0 0.0
        %552 = vmatprep.subr.mxu0 0.0
        %553 = vmatpush1.msra.mxu0 0.0
        %554 = vmatprep.subr.mxu0 0.0
        %555 = vmatpush1.msra.mxu0 0.0
        %556 = vmatprep.subr.mxu0 0.0
        %557 = vmatpush1.msra.mxu0 0.0
        %558 = vmatprep.subr.mxu0 0.0
        %559 = vmatpush1.msra.mxu0 %v529
        %560 = vmatprep.subr.mxu0 0.0
        %561 = vmatpush1.msra.mxu0 %v528
        %562 = vmatprep.subr.mxu0 0.0
        %563 = vmatpush1.msra.mxu0 %v527
        %564 = vmatprep.subr.mxu0 0.0
        %565 = vmatpush1.msra.mxu0 %v526
        %566 = vmatprep.subr.mxu0 0.0
        %567 = vmatpush2.msra.mxu0 0.0
        %568 = vmatprep.subr.mxu0 0.0
        %569 = vmatpush2.msra.mxu0 0.0
        %570 = vmatprep.subr.mxu0 0.0
        %571 = vmatpush2.msra.mxu0 0.0
        %572 = vmatprep.subr.mxu0 0.0
        %573 = vmatpush2.msra.mxu0 0.0
        %574 = vmatprep.subr.mxu0 0.0
        %575 = vmatpush2.msra.mxu0 0.0
        %576 = vmatprep.subr.mxu0 0.0
        %577 = vmatpush2.msra.mxu0 0.0
        %578 = vmatprep.subr.mxu0 0.0
        %579 = vmatpush2.msra.mxu0 0.0
        %580 = vmatprep.subr.mxu0 0.0
        %581 = vmatpush2.msra.mxu0 0.0
        %582 = vmatprep.subr.mxu0 0.0
        %583 = vmatpush2.msra.mxu0 0.0
        %584 = vmatprep.subr.mxu0 0.0
        %585 = vmatpush2.msra.mxu0 0.0
        %586 = vmatprep.subr.mxu0 0.0
        %587 = vmatpush2.msra.mxu0 0.0
        %588 = vmatprep.subr.mxu0 0.0
        %589 = vmatpush2.msra.mxu0 0.0
        %590 = vmatprep.subr.mxu0 0.0
        %591 = vmatpush2.msra.mxu0 0.0
        %592 = vmatprep.subr.mxu0 0.0
        %593 = vmatpush2.msra.mxu0 0.0
        %594 = vmatprep.subr.mxu0 0.0
        %595 = vmatpush2.msra.mxu0 0.0
        %596 = vmatprep.subr.mxu0 0.0
        %597 = vmatpush2.msra.mxu0 0.0
        %598 = vmatprep.mubr.f32.mxu0 0.0
        %599 = vmatmul.mubr.f32.gmra.mxu0 %v532
        %v600 = vpop.f32.mrf.mxu0
        %v601 = vadd.f32 0.0, %v600
        %v602 = vpop.f32.mrf.mxu0
        %603 = vdwg.mxu0
        %vm604 = vcmask 130048
        %v606 = vsel %vm604, %v342, 0
        %608 = vmatprep.subr.mxu0 0.0
        %609 = vmatpush1.msra.mxu0 0.0
        %610 = vmatprep.subr.mxu0 0.0
        %611 = vmatpush1.msra.mxu0 0.0
        %612 = vmatprep.subr.mxu0 0.0
        %613 = vmatpush1.msra.mxu0 0.0
        %614 = vmatprep.subr.mxu0 0.0
        %615 = vmatpush1.msra.mxu0 0.0
        %616 = vmatprep.subr.mxu0 0.0
        %617 = vmatpush1.msra.mxu0 0.0
        %618 = vmatprep.subr.mxu0 0.0
        %619 = vmatpush1.msra.mxu0 0.0
        %620 = vmatprep.subr.mxu0 0.0
        %621 = vmatpush1.msra.mxu0 0.0
        %622 = vmatprep.subr.mxu0 0.0
        %623 = vmatpush1.msra.mxu0 0.0
        %624 = vmatprep.subr.mxu0 0.0
        %625 = vmatpush1.msra.mxu0 0.0
        %626 = vmatprep.subr.mxu0 0.0
        %627 = vmatpush1.msra.mxu0 0.0
        %628 = vmatprep.subr.mxu0 0.0
        %629 = vmatpush1.msra.mxu0 0.0
        %630 = vmatprep.subr.mxu0 0.0
        %631 = vmatpush1.msra.mxu0 0.0
        %632 = vmatprep.subr.mxu0 0.0
        %633 = vmatpush1.msra.mxu0 0.0
        %634 = vmatprep.subr.mxu0 0.0
        %635 = vmatpush1.msra.mxu0 0.0
        %636 = vmatprep.subr.mxu0 0.0
        %637 = vmatpush1.msra.mxu0 %v525
        %638 = vmatprep.subr.mxu0 0.0
        %639 = vmatpush1.msra.mxu0 %v524
        %640 = vmatprep.subr.mxu0 0.0
        %641 = vmatpush2.msra.mxu0 0.0
        %642 = vmatprep.subr.mxu0 0.0
        %643 = vmatpush2.msra.mxu0 0.0
        %644 = vmatprep.subr.mxu0 0.0
        %645 = vmatpush2.msra.mxu0 0.0
        %646 = vmatprep.subr.mxu0 0.0
        %647 = vmatpush2.msra.mxu0 0.0
        %648 = vmatprep.subr.mxu0 0.0
        %649 = vmatpush2.msra.mxu0 0.0
        %650 = vmatprep.subr.mxu0 0.0
        %651 = vmatpush2.msra.mxu0 0.0
        %652 = vmatprep.subr.mxu0 0.0
        %653 = vmatpush2.msra.mxu0 0.0
        %654 = vmatprep.subr.mxu0 0.0
        %655 = vmatpush2.msra.mxu0 0.0
        %656 = vmatprep.subr.mxu0 0.0
        %657 = vmatpush2.msra.mxu0 0.0
        %658 = vmatprep.subr.mxu0 0.0
        %659 = vmatpush2.msra.mxu0 0.0
        %660 = vmatprep.subr.mxu0 0.0
        %661 = vmatpush2.msra.mxu0 0.0
        %662 = vmatprep.subr.mxu0 0.0
        %663 = vmatpush2.msra.mxu0 0.0
        %664 = vmatprep.subr.mxu0 0.0
        %665 = vmatpush2.msra.mxu0 0.0
        %666 = vmatprep.subr.mxu0 0.0
        %667 = vmatpush2.msra.mxu0 0.0
        %668 = vmatprep.subr.mxu0 0.0
        %669 = vmatpush2.msra.mxu0 0.0
        %670 = vmatprep.subr.mxu0 0.0
        %671 = vmatpush2.msra.mxu0 0.0
        %672 = vmatprep.mubr.f32.mxu0 0.0
        %673 = vmatmul.mubr.f32.gmra.mxu0 %v606
        %v674 = vpop.f32.mrf.mxu0
        %v675 = vadd.f32 %v601, %v674
        %v676 = vpop.f32.mrf.mxu0
        %677 = vdwg.mxu0
        %v678 = vld [vmem:[%s4] sm:$0x1]
        %v680 = vlaneseq
        %v681 = vshrl.u32 %v680, 7
        %v682 = vsub.s32 0, %v681
        %v683 = vrot.slane %v678, %v682
        %v685 = vadd.f32 %v675, %v683
        %686 = vst.msk [vmem:[#allocation6] sm:$0xff] %vm530, %v685
        // Predicated region
        $region65: #{tpu_custom_call.1} parent=51 // pred_check
          %p687 = pneg %p212
        $region66: #{tpu_custom_call.1} parent=51 // pred_check_branch
          %689 = sbr.rel (%p687) target = $region68
        $region67: #{tpu_custom_call.1} parent=51 // pred_region
          %s691 = ssub.s32 128, 128
          %692 = vsyncadd [#allocation4], %s691
          %s694 = sshll.u32 [#allocation5], 4
          %s695 = int_to_ptr.vmem [resolvable:$true] %s694
          %697 = dma.vmem_to_hbm [thread:$0]  %s695, 128, %s8, [#allocation4]
        $region68: #{tpu_custom_call.1} parent=51 // pred_fallthru
          _
        // Predicated region
        $region69: #{tpu_custom_call.1} parent=51 // pred_check
          %p698 = pneg %p233
        $region70: #{tpu_custom_call.1} parent=51 // pred_check_branch
          %700 = sbr.rel (%p698) target = $region72
        $region71: #{tpu_custom_call.1} parent=51 // pred_region
          %s702 = ssub.s32 128, 128
          %703 = vsyncadd [#allocation7], %s702
          %s705 = sshll.u32 [#allocation6], 4
          %s706 = int_to_ptr.vmem [resolvable:$true] %s705
          %708 = dma.vmem_to_hbm [thread:$0]  %s706, 128, %s9, [#allocation7]
        $region72: #{tpu_custom_call.1} parent=51 // pred_fallthru
          _
        // Predicated region
        $region73: #{tpu_custom_call.1} parent=51 // pred_check
          %p709 = pneg %p212
        $region74: #{tpu_custom_call.1} parent=51 // pred_check_branch
          %711 = sbr.rel (%p709) target = $region76
        $region75: #{tpu_custom_call.1} parent=51 // pred_region
          %712 = dma.done [#allocation4], 128
        $region76: #{tpu_custom_call.1} parent=51 // pred_fallthru
          _
        // Predicated region
        $region77: #{tpu_custom_call.1} parent=51 // pred_check
          %p713 = pneg %p233
        $region78: #{tpu_custom_call.1} parent=51 // pred_check_branch
          %715 = sbr.rel (%p713) target = $region80
        $region79: #{tpu_custom_call.1} parent=51 // pred_region
          %716 = dma.done [#allocation7], 128
        $region80: #{tpu_custom_call.1} parent=51 // pred_fallthru
          _
      $region52: #{tpu_custom_call.1} parent=5 // pred_fallthru
        _
      %p717 = scmp.le.s32.totalorder 2, %s21
      // Predicated region
      $region81: #{tpu_custom_call.1} parent=5 // pred_check
        %p718 = pneg %p717
      $region82: #{tpu_custom_call.1} parent=5 // pred_check_branch
        %720 = sbr.rel (%p718) target = $region84
      $region83: #{tpu_custom_call.1} parent=5 // pred_region
        %s721 = ssub.s32 %s21, 2
      $region84: #{tpu_custom_call.1} parent=5 // pred_fallthru
        _
    $region6: #{tpu_custom_call.1} parent=1 // loop_footer
      %s25 = sadd.s32 1, %s21
    $region7: #{tpu_custom_call.1} parent=1 // loop_footer_branch
      %20 = sbr.rel target = $region3
    $region8: #{tpu_custom_call.1} parent=1 // loop_exit
      _
    %722 = vsyncpa [#allocation3], 1
    %s723 = scalar_lea.sflag [#allocation3], 1
    %724 = vsyncpa %s723, 1
    %725 = vsyncpa [#allocation4], 1
    %s726 = scalar_lea.sflag [#allocation4], 1
    %727 = vsyncpa %s726, 1
    %728 = vsyncpa [#allocation7], 1

</llo_original>
